<compile_context>
chip_gen: v7x
topology: tpu7x:2x2x1
jax: 0.10.0
libtpu: 0.0.40
codegen_flags: <defaults>
</compile_context>

<pallas_src>
import functools

import jax
import jax.numpy as jnp
from jax.experimental import pallas as pl
from jax.experimental.pallas import tpu as pltpu


def _round_up(a, b):
    return (a + b - 1) // b * b


def _residual_block_kernel(x_ref, w_ref, b_ref, g_ref, beta_ref, o_ref, *,
                           use_proj, dim_out, dim_out_p, eps):
    x = x_ref[...]  # keep native dtype (bf16 stays bf16 on the MXU)

    # Fused matmul: [x @ W1 | x @ Wr] in one MXU pass, f32 accumulation.
    hr = jnp.dot(x, w_ref[...], preferred_element_type=jnp.float32) + b_ref[...]
    h = hr[:, :dim_out_p]
    if use_proj:
        res = hr[:, dim_out_p:]
    else:
        res = x.astype(jnp.float32)  # identity shortcut (x already padded to dim_out_p)

    # LayerNorm over the real dim_out features (padded weight/bias columns are zero,
    # so sums over padded columns of h contribute nothing; variance is masked).
    inv_n = 1.0 / float(dim_out)
    mean = jnp.sum(h, axis=-1, keepdims=True) * inv_n
    centered = h - mean
    if dim_out_p != dim_out:
        lane = jax.lax.broadcasted_iota(jnp.int32, h.shape, 1)
        centered = jnp.where(lane < dim_out, centered, 0.0)
    var = jnp.sum(centered * centered, axis=-1, keepdims=True) * inv_n
    hn = centered * jax.lax.rsqrt(var + eps)
    hn = hn * g_ref[...] + beta_ref[...]

    act = jnp.maximum(hn, 0.0)
    # TODO(synk): Dropout(p=0.2) is identity here (inference); training mode would need
    # pltpu.prng_seed + mask + 1/(1-p) scaling.

    o_ref[...] = (act + res).astype(o_ref.dtype)


def residual_block(x, w1, b1, gamma, beta, wr=None, br=None, *, max_tm=256, eps=1e-5):
    B, dim_in = x.shape
    dim_out = w1.shape[1]
    use_proj = dim_in != dim_out
    if use_proj and (wr is None or br is None):
        raise ValueError("projection shortcut requires wr/br")

    # Lane-dense output features; 8-aligned batch tile (large for real batches).
    dim_out_p = _round_up(dim_out, 128)
    tm = min(max_tm, _round_up(B, 8))
    B_p = _round_up(B, tm)

    def pad_cols(a, n):
        a = a.reshape(1, -1) if a.ndim == 1 else a
        return a if a.shape[-1] == n else jnp.pad(a, ((0, 0), (0, n - a.shape[-1])))

    w1_p = pad_cols(w1, dim_out_p)
    b1_p = pad_cols(b1, dim_out_p)
    g_p = pad_cols(gamma, dim_out_p)
    be_p = pad_cols(beta, dim_out_p)

    if use_proj:
        # Fuse the two matmuls: one wide RHS [W1 | Wr], one bias row [b1 | br].
        w_cat = jnp.concatenate([w1_p, pad_cols(wr, dim_out_p)], axis=1)
        b_cat = jnp.concatenate([b1_p, pad_cols(br, dim_out_p)], axis=1)
        x_p = x
        k_in = dim_in
    else:
        # Identity shortcut: no Wr/br DMA at all; pad x features so the residual add
        # happens on the lane-dense padded width (padded columns stay exactly zero).
        k_in = dim_out_p
        x_p = x if dim_in == k_in else jnp.pad(x, ((0, 0), (0, k_in - dim_in)))
        w_cat = w1_p if w1_p.shape[0] == k_in else jnp.pad(
            w1_p, ((0, k_in - w1_p.shape[0]), (0, 0)))
        b_cat = b1_p

    if B_p != B:
        x_p = jnp.pad(x_p, ((0, B_p - B), (0, 0)))

    w_cols = w_cat.shape[1]

    # VMEM budget (double-buffered tiles + weights + sublane-padded bias rows).
    isz_x = jnp.dtype(x_p.dtype).itemsize
    isz_w = jnp.dtype(w_cat.dtype).itemsize
    est = (2 * tm * k_in * isz_x
           + 2 * k_in * w_cols * isz_w
           + 2 * 8 * (w_cols + 2 * dim_out_p) * 4
           + 2 * tm * dim_out_p * 4)
    vmem_limit = int(max(32 << 20, min(64 << 20, 2 * est)))

    kernel = functools.partial(_residual_block_kernel, use_proj=use_proj,
                               dim_out=dim_out, dim_out_p=dim_out_p, eps=eps)

    out_p = pl.pallas_call(
        kernel,
        out_shape=jax.ShapeDtypeStruct((B_p, dim_out_p), x.dtype),
        grid_spec=pltpu.PrefetchScalarGridSpec(
            num_scalar_prefetch=0,
            grid=(B_p // tm,),
            in_specs=[
                pl.BlockSpec((tm, k_in), lambda i: (i, 0)),         # x tile
                pl.BlockSpec((k_in, w_cols), lambda i: (0, 0)),     # [W1 | Wr] (constant block)
                pl.BlockSpec((1, w_cols), lambda i: (0, 0)),        # [b1 | br]
                pl.BlockSpec((1, dim_out_p), lambda i: (0, 0)),     # LN gamma
                pl.BlockSpec((1, dim_out_p), lambda i: (0, 0)),     # LN beta
            ],
            out_specs=pl.BlockSpec((tm, dim_out_p), lambda i: (i, 0)),
        ),
        compiler_params=pltpu.CompilerParams(
            dimension_semantics=("parallel",),
            vmem_limit_bytes=vmem_limit,
        ),
    )(x_p, w_cat, b_cat, g_p, be_p)

    return out_p[:B, :dim_out]


def _reference(x, w1, b1, gamma, beta, wr=None, br=None, *, eps=1e-5):
    b1 = b1.reshape(1, -1)
    gamma = gamma.reshape(1, -1)
    beta = beta.reshape(1, -1)
    h = x @ w1 + b1
    mean = jnp.mean(h, axis=-1, keepdims=True)
    var = jnp.mean(jnp.square(h - mean), axis=-1, keepdims=True)
    hn = (h - mean) * jax.lax.rsqrt(var + eps) * gamma + beta
    act = jnp.maximum(hn, 0.0)
    res = x if wr is None else x @ wr + br.reshape(1, -1)
    return act + res


if __name__ == "__main__":
    key = jax.random.PRNGKey(0)
    ks = jax.random.split(key, 11)

    # Case 1: projection shortcut (dim_in != dim_out), dim_out not lane-aligned (64 -> 128 pad).
    B, dim_in, dim_out = 8, 32, 64
    x = jax.random.normal(ks[0], (B, dim_in), dtype=jnp.float32)
    w1 = jax.random.normal(ks[1], (dim_in, dim_out), dtype=jnp.float32) * 0.1
    b1 = jax.random.normal(ks[2], (1, dim_out), dtype=jnp.float32) * 0.1
    gamma = jnp.ones((1, dim_out), dtype=jnp.float32)
    beta = jnp.zeros((1, dim_out), dtype=jnp.float32)
    wr = jax.random.normal(ks[3], (dim_in, dim_out), dtype=jnp.float32) * 0.1
    br = jax.random.normal(ks[4], (1, dim_out), dtype=jnp.float32) * 0.1

    out1 = jax.block_until_ready(residual_block(x, w1, b1, gamma, beta, wr, br))
    ref1 = _reference(x, w1, b1, gamma, beta, wr, br)
    assert out1.shape == (B, dim_out)
    assert jnp.allclose(out1, ref1, atol=2e-5, rtol=2e-5), "mismatch (projection case)"

    # Case 2: identity shortcut (dim_in == dim_out), non-tile batch (12) -> batch padding path.
    B2, d2 = 12, 64
    x2 = jax.random.normal(ks[5], (B2, d2), dtype=jnp.float32)
    w1b = jax.random.normal(ks[6], (d2, d2), dtype=jnp.float32) * 0.1
    b1b = jax.random.normal(ks[7], (1, d2), dtype=jnp.float32) * 0.1
    g2 = 1.0 + 0.1 * jax.random.normal(ks[8], (1, d2), dtype=jnp.float32)
    be2 = 0.1 * jax.random.normal(ks[9], (1, d2), dtype=jnp.float32)

    out2 = jax.block_until_ready(residual_block(x2, w1b, b1b, g2, be2))
    ref2 = _reference(x2, w1b, b1b, g2, be2)
    assert out2.shape == (B2, d2)
    assert jnp.allclose(out2, ref2, atol=2e-5, rtol=2e-5), "mismatch (identity case)"

    print("KERNEL_OK")
</pallas_src>

<mosaic_0001>
module attributes {stable_mosaic.version = 11 : i64} {
  func.func @_residual_block_kernel(%arg0: i32, %arg1: memref<8x32xf32, #tpu.memory_space<vmem>>, %arg2: memref<32x256xf32, #tpu.memory_space<vmem>>, %arg3: memref<1x256xf32, #tpu.memory_space<vmem>>, %arg4: memref<1x128xf32, #tpu.memory_space<vmem>>, %arg5: memref<1x128xf32, #tpu.memory_space<vmem>>, %arg6: memref<8x128xf32, #tpu.memory_space<vmem>>) attributes {dimension_semantics = [#tpu.dimension_semantics<parallel>], iteration_bounds = array<i64: 1>, scalar_prefetch = 0 : i64, scratch_operands = 0 : i64, tpu.core_type = #tpu.core_type<tc>, window_params = [{transform_indices = @transform_0, window_bounds = array<i64: 8, 32>}, {pipeline_mode = #tpu.pipeline_mode<synchronous>, transform_indices = @transform_1, window_bounds = array<i64: 32, 256>}, {pipeline_mode = #tpu.pipeline_mode<synchronous>, transform_indices = @transform_2, window_bounds = array<i64: 1, 256>}, {pipeline_mode = #tpu.pipeline_mode<synchronous>, transform_indices = @transform_3, window_bounds = array<i64: 1, 128>}, {pipeline_mode = #tpu.pipeline_mode<synchronous>, transform_indices = @transform_4, window_bounds = array<i64: 1, 128>}, {transform_indices = @transform_5, window_bounds = array<i64: 8, 128>}]} {
    %c0 = arith.constant 0 : index
    %c0_0 = arith.constant 0 : index
    %0 = vector.load %arg1[%c0, %c0_0] : memref<8x32xf32, #tpu.memory_space<vmem>>, vector<8x32xf32>
    %c0_1 = arith.constant 0 : index
    %c0_2 = arith.constant 0 : index
    %1 = vector.load %arg2[%c0_1, %c0_2] : memref<32x256xf32, #tpu.memory_space<vmem>>, vector<32x256xf32>
    %cst = arith.constant dense<0.000000e+00> : vector<8x256xf32>
    %2 = tpu.matmul %0, %1, %cst {dimension_numbers = #tpu.dot_dimension_numbers<[1], [0], [0], [1], [0, 0, 1, 1], [], []>} : vector<8x32xf32>, vector<32x256xf32>, vector<8x256xf32> -> vector<8x256xf32>
    %c0_3 = arith.constant 0 : index
    %c0_4 = arith.constant 0 : index
    %3 = vector.load %arg3[%c0_3, %c0_4] : memref<1x256xf32, #tpu.memory_space<vmem>>, vector<1x256xf32>
    %4 = vector.broadcast %3 : vector<1x256xf32> to vector<8x256xf32>
    %5 = arith.addf %2, %4 : vector<8x256xf32>
    %6 = vector.extract_strided_slice %5 {offsets = [0, 0], sizes = [8, 128], strides = [1, 1]} : vector<8x256xf32> to vector<8x128xf32>
    %7 = vector.extract_strided_slice %5 {offsets = [0, 128], sizes = [8, 128], strides = [1, 1]} : vector<8x256xf32> to vector<8x128xf32>
    %cst_5 = arith.constant dense<0.000000e+00> : vector<8xf32>
    %8 = vector.multi_reduction <add>, %6, %cst_5 [1] : vector<8x128xf32> to vector<8xf32>
    %9 = vector.shape_cast %8 : vector<8xf32> to vector<8x1xf32>
    %cst_6 = arith.constant 1.562500e-02 : f32
    %10 = vector.broadcast %cst_6 : f32 to vector<8x1xf32>
    %11 = arith.mulf %9, %10 : vector<8x1xf32>
    %12 = vector.broadcast %11 : vector<8x1xf32> to vector<8x128xf32>
    %13 = arith.subf %6, %12 : vector<8x128xf32>
    %14 = tpu.iota {dimensions = array<i32: 1>} : vector<8x128xi32>
    %c64_i32 = arith.constant 64 : i32
    %15 = vector.broadcast %c64_i32 : i32 to vector<8x128xi32>
    %16 = arith.cmpi slt, %14, %15 : vector<8x128xi32>
    %cst_7 = arith.constant 0.000000e+00 : f32
    %17 = vector.broadcast %cst_7 : f32 to vector<8x128xf32>
    %18 = arith.select %16, %13, %17 : vector<8x128xi1>, vector<8x128xf32>
    %19 = arith.mulf %18, %18 : vector<8x128xf32>
    %cst_8 = arith.constant dense<0.000000e+00> : vector<8xf32>
    %20 = vector.multi_reduction <add>, %19, %cst_8 [1] : vector<8x128xf32> to vector<8xf32>
    %21 = vector.shape_cast %20 : vector<8xf32> to vector<8x1xf32>
    %cst_9 = arith.constant 1.562500e-02 : f32
    %22 = vector.broadcast %cst_9 : f32 to vector<8x1xf32>
    %23 = arith.mulf %21, %22 : vector<8x1xf32>
    %cst_10 = arith.constant 9.99999974E-6 : f32
    %24 = vector.broadcast %cst_10 : f32 to vector<8x1xf32>
    %25 = arith.addf %23, %24 : vector<8x1xf32>
    %26 = math.rsqrt %25 : vector<8x1xf32>
    %27 = vector.broadcast %26 : vector<8x1xf32> to vector<8x128xf32>
    %28 = arith.mulf %18, %27 : vector<8x128xf32>
    %c0_11 = arith.constant 0 : index
    %c0_12 = arith.constant 0 : index
    %29 = vector.load %arg4[%c0_11, %c0_12] : memref<1x128xf32, #tpu.memory_space<vmem>>, vector<1x128xf32>
    %30 = vector.broadcast %29 : vector<1x128xf32> to vector<8x128xf32>
    %31 = arith.mulf %28, %30 : vector<8x128xf32>
    %c0_13 = arith.constant 0 : index
    %c0_14 = arith.constant 0 : index
    %32 = vector.load %arg5[%c0_13, %c0_14] : memref<1x128xf32, #tpu.memory_space<vmem>>, vector<1x128xf32>
    %33 = vector.broadcast %32 : vector<1x128xf32> to vector<8x128xf32>
    %34 = arith.addf %31, %33 : vector<8x128xf32>
    %cst_15 = arith.constant 0.000000e+00 : f32
    %35 = vector.broadcast %cst_15 : f32 to vector<8x128xf32>
    %36 = arith.maximumf %34, %35 : vector<8x128xf32>
    %37 = arith.addf %36, %7 : vector<8x128xf32>
    %c0_16 = arith.constant 0 : index
    %c0_17 = arith.constant 0 : index
    %38 = vector.load %arg6[%c0_16, %c0_17] : memref<8x128xf32, #tpu.memory_space<vmem>>, vector<8x128xf32>
    tpu.vector_store %arg6[%c0_16, %c0_17], %37 {strides = array<i32>} : memref<8x128xf32, #tpu.memory_space<vmem>>, vector<8x128xf32>,
    return
  }
  func.func @transform_0(%arg0: i32) -> (i32, i32) {
    %c0_i32 = arith.constant 0 : i32
    %c0_i32_0 = arith.constant 0 : i32
    return %arg0, %c0_i32 : i32, i32
  }
  func.func @transform_1(%arg0: i32) -> (i32, i32) {
    %c0_i32 = arith.constant 0 : i32
    %c0_i32_0 = arith.constant 0 : i32
    %c0_i32_1 = arith.constant 0 : i32
    return %c0_i32, %c0_i32_0 : i32, i32
  }
  func.func @transform_2(%arg0: i32) -> (i32, i32) {
    %c0_i32 = arith.constant 0 : i32
    %c0_i32_0 = arith.constant 0 : i32
    %c0_i32_1 = arith.constant 0 : i32
    return %c0_i32, %c0_i32_0 : i32, i32
  }
  func.func @transform_3(%arg0: i32) -> (i32, i32) {
    %c0_i32 = arith.constant 0 : i32
    %c0_i32_0 = arith.constant 0 : i32
    %c0_i32_1 = arith.constant 0 : i32
    return %c0_i32, %c0_i32_0 : i32, i32
  }
  func.func @transform_4(%arg0: i32) -> (i32, i32) {
    %c0_i32 = arith.constant 0 : i32
    %c0_i32_0 = arith.constant 0 : i32
    %c0_i32_1 = arith.constant 0 : i32
    return %c0_i32, %c0_i32_0 : i32, i32
  }
  func.func @transform_5(%arg0: i32) -> (i32, i32) {
    %c0_i32 = arith.constant 0 : i32
    %c0_i32_0 = arith.constant 0 : i32
    return %arg0, %c0_i32 : i32, i32
  }
}

</mosaic_0001>

<llo_original>
// kernel: tpu_custom_call.1
$region0: #{tpu_custom_call.1}
  #allocation0 [shape = 'u32[]', space=smem, size = 0x4, offset = 0x4, fixed_abs, tag = 'smem constant byte address 0x4 - core index']
  #allocation1 [shape = 'u32[144,128]{1,0:T(1,128)}', space=vmem, size = 0x12000, scoped, tag = 'internal scratch']
  %s0 = inlined_call_operand.hbm [shape: f32[8,32], index: 0, kind: input, shape index: {}]
  %s1 = inlined_call_operand.hbm [shape: f32[32,256], index: 1, kind: input, shape index: {}]
  %s2 = inlined_call_operand.vmem [shape: f32[1,256], index: 2, kind: input, shape index: {}]
  %s3 = inlined_call_operand.vmem [shape: f32[1,128], index: 3, kind: input, shape index: {}]
  %s4 = inlined_call_operand.vmem [shape: f32[1,128], index: 4, kind: input, shape index: {}]
  %s5 = inlined_call_operand.hbm [shape: f32[8,128], index: 5, kind: output, shape index: {}]
  %s6 = sld [smem:[#allocation0]]
  $region38: #{tpu_custom_call.1} parent=0
    _
  %s8 = ssub.s32 1, %s6
  %s9 = scalar_select 0, %s8, %s6
  $region1: #{tpu_custom_call.1} parent=0
    #allocation2 [shape = 'u8[4096]{0}', space=vmem, size = 0x1000, scoped, tag = 'input window, operand 0, single buffered']
    #allocation3 [shape = 's32[1]{0}', space=sflag, size = 0x4, scoped, tag = 'scoped memory for tpu_custom_call.1']
    #allocation4 [shape = 's32[1]{0}', space=sflag, size = 0x4, scoped, tag = 'scoped memory for tpu_custom_call.1']
    #allocation5 [shape = 'u8[32768]{0}', space=vmem, size = 0x8000, scoped, tag = 'input window, operand 1, single buffered']
    #allocation6 [shape = 's32[1]{0}', space=sflag, size = 0x4, scoped, tag = 'scoped memory for tpu_custom_call.1']
    #allocation7 [shape = 'u8[4096]{0}', space=vmem, size = 0x1000, scoped, tag = 'output window, operand 0, single buffered']
    %10 = vsyncpa [#allocation3], 0
    %11 = vsyncpa [#allocation6], 0
    %12 = vsyncpa [#allocation4], 0
    // Predicated region
    $region2: #{tpu_custom_call.1} parent=1 // pred_check
      _
    $region3: #{tpu_custom_call.1} parent=1 // pred_check_branch
      %14 = sbr.rel (0) target = $region5
    $region4: #{tpu_custom_call.1} parent=1 // pred_region
      %s16 = ssub.s32 128, 128
      %17 = vsyncadd [#allocation3], %s16
      %s19 = sshll.u32 [#allocation2], 4
      %s20 = int_to_ptr.vmem [resolvable:$true] %s19
      %22 = dma.hbm_to_vmem [thread:$0]  %s0, 128, %s20, [#allocation3]
    $region5: #{tpu_custom_call.1} parent=1 // pred_fallthru
      _
    // Predicated region
    $region6: #{tpu_custom_call.1} parent=1 // pred_check
      _
    $region7: #{tpu_custom_call.1} parent=1 // pred_check_branch
      %24 = sbr.rel (0) target = $region9
    $region8: #{tpu_custom_call.1} parent=1 // pred_region
      %s26 = ssub.s32 1024, 1024
      %27 = vsyncadd [#allocation6], %s26
      %s28 = sshll.u32 [#allocation5], 4
      %s29 = int_to_ptr.vmem [resolvable:$true] %s28
      %34 = dma.hbm_to_vmem [thread:$0]  %s1, 1024, %s29, [#allocation6], 256, 256, 16
    $region9: #{tpu_custom_call.1} parent=1 // pred_fallthru
      _
    // Predicated region
    $region10: #{tpu_custom_call.1} parent=1 // pred_check
      _
    $region11: #{tpu_custom_call.1} parent=1 // pred_check_branch
      %36 = sbr.rel (0) target = $region13
    $region12: #{tpu_custom_call.1} parent=1 // pred_region
      _
    $region13: #{tpu_custom_call.1} parent=1 // pred_fallthru
      _
    // Predicated region
    $region14: #{tpu_custom_call.1} parent=1 // pred_check
      _
    $region15: #{tpu_custom_call.1} parent=1 // pred_check_branch
      %38 = sbr.rel (0) target = $region17
    $region16: #{tpu_custom_call.1} parent=1 // pred_region
      _
    $region17: #{tpu_custom_call.1} parent=1 // pred_fallthru
      _
    // Predicated region
    $region18: #{tpu_custom_call.1} parent=1 // pred_check
      _
    $region19: #{tpu_custom_call.1} parent=1 // pred_check_branch
      %40 = sbr.rel (0) target = $region21
    $region20: #{tpu_custom_call.1} parent=1 // pred_region
      _
    $region21: #{tpu_custom_call.1} parent=1 // pred_fallthru
      _
    // Predicated region
    $region22: #{tpu_custom_call.1} parent=1 // pred_check
      _
    $region23: #{tpu_custom_call.1} parent=1 // pred_check_branch
      %42 = sbr.rel (0) target = $region25
    $region24: #{tpu_custom_call.1} parent=1 // pred_region
      %43 = dma.done [#allocation3], 128
    $region25: #{tpu_custom_call.1} parent=1 // pred_fallthru
      _
    // Predicated region
    $region26: #{tpu_custom_call.1} parent=1 // pred_check
      _
    $region27: #{tpu_custom_call.1} parent=1 // pred_check_branch
      %45 = sbr.rel (0) target = $region29
    $region28: #{tpu_custom_call.1} parent=1 // pred_region
      %46 = dma.done [#allocation6], 1024
    $region29: #{tpu_custom_call.1} parent=1 // pred_fallthru
      _
    %v47 = vld [vmem:[#allocation2] sm:$0xff]
    %v48 = vld [vmem:[#allocation5] sm:$0xff]
    %v49 = vld [vmem:[#allocation5 + $0x8] sm:$0xff]
    %v50 = vld [vmem:[#allocation5 + $0x10] sm:$0xff]
    %v51 = vld [vmem:[#allocation5 + $0x18] sm:$0xff]
    %v52 = vld [vmem:[#allocation5 + $0x20] sm:$0xff]
    %v53 = vld [vmem:[#allocation5 + $0x28] sm:$0xff]
    %v54 = vld [vmem:[#allocation5 + $0x30] sm:$0xff]
    %v55 = vld [vmem:[#allocation5 + $0x38] sm:$0xff]
    %v56 = vld [vmem:[%s2] sm:$0x3]
    %v58 = vlaneseq
    %v59 = vshrl.u32 %v58, 7
    %v60 = vsub.s32 0, %v59
    %v61 = vrot.slane %v56, %v60
    %v62 = vlaneseq
    %v63 = vshrl.u32 %v62, 7
    %v64 = vsub.s32 1, %v63
    %v65 = vrot.slane %v56, %v64
    %vm68 = vcmask 261120
    %v70 = vsel %vm68, %v47, 0
    %72 = vmatprep.subr.mxu0 %v49
    %73 = vmatpush1.msra.mxu0 %v48
    %74 = vmatprep.subr.mxu0 %v51
    %75 = vmatpush1.msra.mxu0 %v50
    %76 = vmatprep.subr.mxu0 %v53
    %77 = vmatpush1.msra.mxu0 %v52
    %78 = vmatprep.subr.mxu0 %v55
    %79 = vmatpush1.msra.mxu0 %v54
    %80 = vmatprep.subr.mxu0 0.0
    %81 = vmatpush1.msra.mxu0 0.0
    %82 = vmatprep.subr.mxu0 0.0
    %83 = vmatpush1.msra.mxu0 0.0
    %84 = vmatprep.subr.mxu0 0.0
    %85 = vmatpush1.msra.mxu0 0.0
    %86 = vmatprep.subr.mxu0 0.0
    %87 = vmatpush1.msra.mxu0 0.0
    %88 = vmatprep.subr.mxu0 0.0
    %89 = vmatpush1.msra.mxu0 0.0
    %90 = vmatprep.subr.mxu0 0.0
    %91 = vmatpush1.msra.mxu0 0.0
    %92 = vmatprep.subr.mxu0 0.0
    %93 = vmatpush1.msra.mxu0 0.0
    %94 = vmatprep.subr.mxu0 0.0
    %95 = vmatpush1.msra.mxu0 0.0
    %96 = vmatprep.subr.mxu0 0.0
    %97 = vmatpush1.msra.mxu0 0.0
    %98 = vmatprep.subr.mxu0 0.0
    %99 = vmatpush1.msra.mxu0 0.0
    %100 = vmatprep.subr.mxu0 0.0
    %101 = vmatpush1.msra.mxu0 0.0
    %102 = vmatprep.subr.mxu0 0.0
    %103 = vmatpush1.msra.mxu0 0.0
    %104 = vmatprep.subr.mxu0 0.0
    %105 = vmatpush1.msra.mxu0 0.0
    %106 = vmatprep.subr.mxu0 0.0
    %107 = vmatpush1.msra.mxu0 0.0
    %108 = vmatprep.subr.mxu0 0.0
    %109 = vmatpush1.msra.mxu0 0.0
    %110 = vmatprep.subr.mxu0 0.0
    %111 = vmatpush1.msra.mxu0 0.0
    %112 = vmatprep.subr.mxu0 0.0
    %113 = vmatpush1.msra.mxu0 0.0
    %114 = vmatprep.subr.mxu0 0.0
    %115 = vmatpush1.msra.mxu0 0.0
    %116 = vmatprep.subr.mxu0 0.0
    %117 = vmatpush1.msra.mxu0 0.0
    %118 = vmatprep.subr.mxu0 0.0
    %119 = vmatpush1.msra.mxu0 0.0
    %120 = vmatprep.subr.mxu0 0.0
    %121 = vmatpush1.msra.mxu0 0.0
    %122 = vmatprep.subr.mxu0 0.0
    %123 = vmatpush1.msra.mxu0 0.0
    %124 = vmatprep.subr.mxu0 0.0
    %125 = vmatpush1.msra.mxu0 0.0
    %126 = vmatprep.subr.mxu0 0.0
    %127 = vmatpush1.msra.mxu0 0.0
    %128 = vmatprep.subr.mxu0 0.0
    %129 = vmatpush1.msra.mxu0 0.0
    %130 = vmatprep.subr.mxu0 0.0
    %131 = vmatpush1.msra.mxu0 0.0
    %132 = vmatprep.subr.mxu0 0.0
    %133 = vmatpush1.msra.mxu0 0.0
    %134 = vmatprep.subr.mxu0 0.0
    %135 = vmatpush1.msra.mxu0 0.0
    %136 = vmatprep.mubr.f32.mxu0 0.0
    %137 = vmatmul.mubr.f32.gmra.mrb[0].mxu0 %v70
    %v138 = vpop.f32.mrb[0].mxu0
    %v139 = vadd.f32 %v61, %v138
    %v140 = vpop.f32.mrb[0].mxu0
    %v141 = vadd.f32 %v65, %v140
    %142 = vdwg.mxu0
    %143 = vadd.xlane.f32.xlu0 %v139
    %v144 = vpop.xlane.xlu0 %143
    %v145 = vmul.f32 %v144, 0.015625
    %v146 = vsub.f32 %v139, %v145
    %v147 = vlaneseq
    %v148 = vand.u32 %v147, 127
    %vm149 = vcmp.lt.s32.totalorder %v148, 64
    %v150 = vsel %vm149, %v146, 0.0
    %v151 = vmul.f32 %v150, %v150
    %152 = vadd.xlane.f32.xlu0 %v151
    %v153 = vpop.xlane.xlu0 %152
    %v154 = vmul.f32 %v153, 0.015625
    %v155 = vadd.f32 %v154, 1e-05
    %v156 = vrsqrt.pop %v155
    %v157 = vmul.f32 %v150, %v156
    %v158 = vld [vmem:[%s3] sm:$0x1]
    %v160 = vlaneseq
    %v161 = vshrl.u32 %v160, 7
    %v162 = vsub.s32 0, %v161
    %v163 = vrot.slane %v158, %v162
    %v165 = vmul.f32 %v157, %v163
    %v166 = vld [vmem:[%s4] sm:$0x1]
    %v168 = vlaneseq
    %v169 = vshrl.u32 %v168, 7
    %v170 = vsub.s32 0, %v169
    %v171 = vrot.slane %v166, %v170
    %v173 = vadd.f32 %v165, %v171
    %v174 = vmax.f32 %v173, 0.0
    %v175 = vadd.f32 %v174, %v141
    %176 = vst [vmem:[#allocation7] sm:$0xff] %v175
    // Predicated region
    $region30: #{tpu_custom_call.1} parent=1 // pred_check
      _
    $region31: #{tpu_custom_call.1} parent=1 // pred_check_branch
      %178 = sbr.rel (0) target = $region33
    $region32: #{tpu_custom_call.1} parent=1 // pred_region
      %s180 = ssub.s32 128, 128
      %181 = vsyncadd [#allocation4], %s180
      %s183 = sshll.u32 [#allocation7], 4
      %s184 = int_to_ptr.vmem [resolvable:$true] %s183
      %186 = dma.vmem_to_hbm [thread:$0]  %s184, 128, %s5, [#allocation4]
    $region33: #{tpu_custom_call.1} parent=1 // pred_fallthru
      _
    // Predicated region
    $region34: #{tpu_custom_call.1} parent=1 // pred_check
      _
    $region35: #{tpu_custom_call.1} parent=1 // pred_check_branch
      %188 = sbr.rel (0) target = $region37
    $region36: #{tpu_custom_call.1} parent=1 // pred_region
      %189 = dma.done [#allocation4], 128
    $region37: #{tpu_custom_call.1} parent=1 // pred_fallthru
      _
    %190 = vsyncpa [#allocation3], 1
    %191 = vsyncpa [#allocation6], 1
    %192 = vsyncpa [#allocation4], 1

</llo_original>
